<compile_context>
chip_gen: v7x
topology: tpu7x:2x2x1
jax: 0.10.0
libtpu: 0.0.40
codegen_flags: <defaults>
</compile_context>

<pallas_src>
import functools

import jax
import jax.numpy as jnp
from jax.experimental import pallas as pl
from jax.experimental.pallas import tpu as pltpu


def _round_up(x: int, m: int) -> int:
    return (x + m - 1) // m * m


def _cdiv(a: int, b: int) -> int:
    return (a + b - 1) // b


# minimum batch-tile rounding per element size (f32 -> 8 sublanes,
# bf16 packs 2 rows/sublane -> 16, int8/fp8 -> 32)
_MIN_ROWS = {4: 8, 2: 16, 1: 32}


# ----------------------------------------------------------------------------
# One-time (offline) parameter packing — NOT in the per-call hot path.
# ----------------------------------------------------------------------------
def pack_gaussian_params(w_mean, b_mean, w_scale, b_scale, *, compute_dtype=None):
    """Pack the two nn.Linear heads for the kernel.

    w_*: [P, in_dim] (PyTorch Linear layout), b_*: [P].
    Weights are stored pre-transposed as [in_dim, n_out] ([K, N]) with each
    head's output padded to a 128-lane boundary so the in-kernel mean/scale
    split is lane-aligned.  Biases are kept in f32 (added to the f32 acc).
    """
    P, in_dim = w_mean.shape
    Pp = _round_up(P, 128)
    compute_dtype = compute_dtype or w_mean.dtype

    def head(w, b):
        wt = jnp.pad(w.T.astype(compute_dtype), ((0, 0), (0, Pp - P)))  # [K, Pp]
        bp = jnp.pad(b.astype(jnp.float32), ((0, Pp - P),))             # [Pp]
        return wt, bp

    wm, bm = head(w_mean, b_mean)
    ws, bs = head(w_scale, b_scale)
    return {
        "P": P, "Pp": Pp, "in_dim": in_dim,
        # fused (mean + scale) pack, used when zero_std=False
        "w2": jnp.concatenate([wm, ws], axis=1),              # [K, 2*Pp]
        "b2": jnp.concatenate([bm, bs]).reshape(1, 2 * Pp),   # [1, 2*Pp]
        # mean-only pack, used when zero_std=True (scale head skipped)
        "w1": wm,                                             # [K, Pp]
        "b1": bm.reshape(1, Pp),                              # [1, Pp]
    }


# ----------------------------------------------------------------------------
# Kernels
# ----------------------------------------------------------------------------
def _gaussian_fused_kernel(x_ref, w_ref, b_ref, mean_ref, std_ref,
                           *, p: int, pp: int, tanh_mean: bool, min_std: float):
    """x_ref: [tb, K]; w_ref: [K, 2*pp] (mean cols then scale cols, each head
    padded to pp lanes); b_ref: [1, 2*pp] f32; outputs: [tb, p] each."""
    out = jnp.dot(x_ref[...], w_ref[...], preferred_element_type=jnp.float32)
    out = out + b_ref[...]                      # [tb, 2*pp], f32

    mean = out[:, :p]                           # lane-aligned start (0)
    scale = out[:, pp:pp + p]                   # lane-aligned start (pp % 128 == 0)

    if tanh_mean:
        mean = jnp.tanh(mean)
    # softplus(scale) + min_std, numerically stable (exp/log1p hit the EUP).
    std = jnp.logaddexp(scale, 0.0) + min_std

    mean_ref[...] = mean.astype(mean_ref.dtype)
    std_ref[...] = std.astype(std_ref.dtype)


def _gaussian_mean_kernel(x_ref, w_ref, b_ref, mean_ref,
                          *, p: int, tanh_mean: bool):
    """zero_std path: mean head only (scale matmul + weight DMA skipped)."""
    out = jnp.dot(x_ref[...], w_ref[...], preferred_element_type=jnp.float32)
    out = out + b_ref[...]
    mean = out[:, :p]
    if tanh_mean:
        mean = jnp.tanh(mean)
    mean_ref[...] = mean.astype(mean_ref.dtype)


# ----------------------------------------------------------------------------
# Tile selection with an explicit VMEM budget
# ----------------------------------------------------------------------------
def _pick_batch_tile(B, in_dim, n_out, P, x_bytes, w_bytes, out_bytes, block_b):
    min_rows = _MIN_ROWS.get(x_bytes, 8)
    tb = min(block_b, _round_up(B, min_rows))
    tb = max(min_rows, tb // min_rows * min_rows)

    def footprint(t):
        xb = 2 * t * in_dim * x_bytes          # double-buffered x tiles
        wb = 2 * n_out * in_dim * w_bytes      # resident packed weights (2 bufs)
        bb = 2 * n_out * 4                     # bias
        ob = 2 * 2 * t * P * out_bytes         # two outputs, double-buffered
        acc = t * n_out * 4                    # f32 matmul result
        return xb + wb + bb + ob + acc

    budget = 40 << 20   # conservative: leaves headroom on v7x's 64 MiB VMEM
    while tb > min_rows and footprint(tb) > budget:
        tb = max(min_rows, (tb // 2) // min_rows * min_rows)

    # Balance tiles to minimize last-tile waste; keep >= 2 tiles when B allows
    # so ("parallel",) actually feeds both TensorCores on v7x.
    n_tiles = _cdiv(B, tb)
    if n_tiles == 1 and B >= 2 * min_rows:
        n_tiles = 2
    tb = _round_up(_cdiv(B, n_tiles), min_rows)
    return tb, footprint(tb)


# ----------------------------------------------------------------------------
# Forward wrapper (hot path)
# ----------------------------------------------------------------------------
def gaussian_forward(x, packed, *, min_std=1e-4, tanh_mean=False,
                     zero_std=False, block_b=512, out_dtype=None):
    """x: [B, in_dim]; packed: result of pack_gaussian_params.
    Returns (mean, std), each [B, num_ac_pred]."""
    B, in_dim = x.shape
    assert in_dim == packed["in_dim"]
    P, Pp = packed["P"], packed["Pp"]
    out_dtype = out_dtype or x.dtype

    if zero_std:
        w, b = packed["w1"], packed["b1"]
    else:
        w, b = packed["w2"], packed["b2"]
    n_out = w.shape[1]

    x_bytes = jnp.dtype(x.dtype).itemsize
    w_bytes = jnp.dtype(w.dtype).itemsize
    out_bytes = jnp.dtype(out_dtype).itemsize
    tb, fp = _pick_batch_tile(B, in_dim, n_out, P,
                              x_bytes, w_bytes, out_bytes, block_b)

    # No x padding: Pallas masks the partial last block.
    grid = (_cdiv(B, tb),)
    x_spec = pl.BlockSpec((tb, in_dim), lambda i: (i, 0))
    w_spec = pl.BlockSpec((in_dim, n_out), lambda i: (0, 0))   # resident
    b_spec = pl.BlockSpec((1, n_out), lambda i: (0, 0))        # resident
    out_spec = pl.BlockSpec((tb, P), lambda i: (i, 0))         # true width

    vmem_limit = int(min(48 << 20, max(32 << 20, fp + (8 << 20))))
    cparams = pltpu.CompilerParams(dimension_semantics=("parallel",),
                                   vmem_limit_bytes=vmem_limit)

    if zero_std:
        kernel = functools.partial(_gaussian_mean_kernel, p=P,
                                   tanh_mean=tanh_mean)
        mean = pl.pallas_call(
            kernel,
            grid=grid,
            in_specs=[x_spec, w_spec, b_spec],
            out_specs=out_spec,
            out_shape=jax.ShapeDtypeStruct((B, P), out_dtype),
            compiler_params=cparams,
        )(x, w, b)
        std = jnp.full((B, P), min_std, dtype=out_dtype)
        return mean, std

    kernel = functools.partial(_gaussian_fused_kernel, p=P, pp=Pp,
                               tanh_mean=tanh_mean, min_std=float(min_std))
    mean, std = pl.pallas_call(
        kernel,
        grid=grid,
        in_specs=[x_spec, w_spec, b_spec],
        out_specs=[out_spec, out_spec],
        out_shape=(jax.ShapeDtypeStruct((B, P), out_dtype),
                   jax.ShapeDtypeStruct((B, P), out_dtype)),
        compiler_params=cparams,
    )(x, w, b)
    return mean, std


# ----------------------------------------------------------------------------
# Reference + self-test
# ----------------------------------------------------------------------------
def _reference(x, w_mean, b_mean, w_scale, b_scale,
               *, min_std=1e-4, tanh_mean=False, zero_std=False):
    mean = x @ w_mean.T + b_mean
    scale = x @ w_scale.T + b_scale
    if tanh_mean:
        mean = jnp.tanh(mean)
    std = (jnp.full_like(scale, min_std) if zero_std
           else jax.nn.softplus(scale) + min_std)
    return mean, std


if __name__ == "__main__":
    # small shapes consistent with the module's forward
    B, in_dim, ac_dim, ac_chunk = 8, 32, 4, 2
    num_ac_pred = ac_dim * ac_chunk
    min_std = 1e-4

    key = jax.random.PRNGKey(0)
    kx, kwm, kbm, kws, kbs = jax.random.split(key, 5)

    x = jax.random.normal(kx, (B, in_dim), dtype=jnp.float32)
    # deterministic Linear init (synthetic; matches nn.Linear shapes)
    bound = 1.0 / (in_dim ** 0.5)
    w_mean = jax.random.uniform(kwm, (num_ac_pred, in_dim), jnp.float32, -bound, bound)
    b_mean = jax.random.uniform(kbm, (num_ac_pred,), jnp.float32, -bound, bound)
    w_scale = jax.random.uniform(kws, (num_ac_pred, in_dim), jnp.float32, -bound, bound)
    b_scale = jax.random.uniform(kbs, (num_ac_pred,), jnp.float32, -bound, bound)

    # One-time pack (out of the per-call hot path).
    packed = pack_gaussian_params(w_mean, b_mean, w_scale, b_scale)

    mean, std = gaussian_forward(x, packed, min_std=min_std,
                                 tanh_mean=False, zero_std=False)
    jax.block_until_ready((mean, std))

    ref_mean, ref_std = _reference(x, w_mean, b_mean, w_scale, b_scale,
                                   min_std=min_std, tanh_mean=False, zero_std=False)
    assert mean.shape == (B, num_ac_pred) and std.shape == (B, num_ac_pred)
    assert jnp.allclose(mean, ref_mean, atol=1e-5, rtol=1e-5)
    assert jnp.allclose(std, ref_std, atol=1e-5, rtol=1e-5)

    # tanh_mean branch (fused path)
    m1, s1 = gaussian_forward(x, packed, min_std=min_std,
                              tanh_mean=True, zero_std=False)
    jax.block_until_ready((m1, s1))
    assert jnp.allclose(m1, jnp.tanh(ref_mean), atol=1e-5, rtol=1e-5)
    assert jnp.allclose(s1, ref_std, atol=1e-5, rtol=1e-5)

    # zero_std branch (mean-only kernel, scale head skipped entirely)
    m2, s2 = gaussian_forward(x, packed, min_std=min_std,
                              tanh_mean=True, zero_std=True)
    jax.block_until_ready((m2, s2))
    assert jnp.allclose(m2, jnp.tanh(ref_mean), atol=1e-5, rtol=1e-5)
    assert jnp.allclose(s2, jnp.full_like(s2, min_std))

    # TODO(synk): D.Normal.sample() (get_actions) needs host-side RNG plumbing;
    # the kernel returns the distribution parameters (loc, scale) instead.
    print("KERNEL_OK")
</pallas_src>

<mosaic_0001>
module attributes {stable_mosaic.version = 11 : i64} {
  func.func @_gaussian_fused_kernel(%arg0: i32, %arg1: memref<8x32xf32, #tpu.memory_space<vmem>>, %arg2: memref<32x256xf32, #tpu.memory_space<vmem>>, %arg3: memref<1x256xf32, #tpu.memory_space<vmem>>, %arg4: memref<8x8xf32, #tpu.memory_space<vmem>>, %arg5: memref<8x8xf32, #tpu.memory_space<vmem>>) attributes {dimension_semantics = [#tpu.dimension_semantics<parallel>], iteration_bounds = array<i64: 1>, scalar_prefetch = 0 : i64, scratch_operands = 0 : i64, tpu.core_type = #tpu.core_type<tc>, window_params = [{transform_indices = @transform_0, window_bounds = array<i64: 8, 32>}, {pipeline_mode = #tpu.pipeline_mode<synchronous>, transform_indices = @transform_1, window_bounds = array<i64: 32, 256>}, {pipeline_mode = #tpu.pipeline_mode<synchronous>, transform_indices = @transform_2, window_bounds = array<i64: 1, 256>}, {transform_indices = @transform_3, window_bounds = array<i64: 8, 8>}, {transform_indices = @transform_4, window_bounds = array<i64: 8, 8>}]} {
    %c0 = arith.constant 0 : index
    %c0_0 = arith.constant 0 : index
    %0 = vector.load %arg1[%c0, %c0_0] : memref<8x32xf32, #tpu.memory_space<vmem>>, vector<8x32xf32>
    %c0_1 = arith.constant 0 : index
    %c0_2 = arith.constant 0 : index
    %1 = vector.load %arg2[%c0_1, %c0_2] : memref<32x256xf32, #tpu.memory_space<vmem>>, vector<32x256xf32>
    %cst = arith.constant dense<0.000000e+00> : vector<8x256xf32>
    %2 = tpu.matmul %0, %1, %cst {dimension_numbers = #tpu.dot_dimension_numbers<[1], [0], [0], [1], [0, 0, 1, 1], [], []>} : vector<8x32xf32>, vector<32x256xf32>, vector<8x256xf32> -> vector<8x256xf32>
    %c0_3 = arith.constant 0 : index
    %c0_4 = arith.constant 0 : index
    %3 = vector.load %arg3[%c0_3, %c0_4] : memref<1x256xf32, #tpu.memory_space<vmem>>, vector<1x256xf32>
    %4 = vector.broadcast %3 : vector<1x256xf32> to vector<8x256xf32>
    %5 = arith.addf %2, %4 : vector<8x256xf32>
    %6 = vector.extract_strided_slice %5 {offsets = [0, 0], sizes = [8, 8], strides = [1, 1]} : vector<8x256xf32> to vector<8x8xf32>
    %7 = vector.extract_strided_slice %5 {offsets = [0, 128], sizes = [8, 8], strides = [1, 1]} : vector<8x256xf32> to vector<8x8xf32>
    %cst_5 = arith.constant 0.000000e+00 : f32
    %8 = vector.broadcast %cst_5 : f32 to vector<8x8xf32>
    %9 = arith.maximumf %7, %8 : vector<8x8xf32>
    %10 = vector.broadcast %cst_5 : f32 to vector<8x8xf32>
    %11 = arith.subf %7, %10 : vector<8x8xf32>
    %12 = arith.cmpf one, %11, %11 : vector<8x8xf32>
    %13 = vector.broadcast %cst_5 : f32 to vector<8x8xf32>
    %14 = arith.addf %7, %13 : vector<8x8xf32>
    %15 = math.absf %11 : vector<8x8xf32>
    %cst_6 = arith.constant 0.000000e+00 : f32
    %16 = vector.broadcast %cst_6 : f32 to vector<8x8xf32>
    %17 = arith.subf %16, %15 : vector<8x8xf32>
    %18 = math.exp %17 : vector<8x8xf32>
    %19 = math.log1p %18 : vector<8x8xf32>
    %20 = arith.addf %9, %19 : vector<8x8xf32>
    %21 = arith.select %12, %14, %20 : vector<8x8xi1>, vector<8x8xf32>
    %cst_7 = arith.constant 9.99999974E-5 : f32
    %22 = vector.broadcast %cst_7 : f32 to vector<8x8xf32>
    %23 = arith.addf %21, %22 : vector<8x8xf32>
    %c0_8 = arith.constant 0 : index
    %c0_9 = arith.constant 0 : index
    %24 = vector.load %arg4[%c0_8, %c0_9] : memref<8x8xf32, #tpu.memory_space<vmem>>, vector<8x8xf32>
    tpu.vector_store %arg4[%c0_8, %c0_9], %6 {strides = array<i32>} : memref<8x8xf32, #tpu.memory_space<vmem>>, vector<8x8xf32>,
    %c0_10 = arith.constant 0 : index
    %c0_11 = arith.constant 0 : index
    %25 = vector.load %arg5[%c0_10, %c0_11] : memref<8x8xf32, #tpu.memory_space<vmem>>, vector<8x8xf32>
    tpu.vector_store %arg5[%c0_10, %c0_11], %23 {strides = array<i32>} : memref<8x8xf32, #tpu.memory_space<vmem>>, vector<8x8xf32>,
    return
  }
  func.func @transform_0(%arg0: i32) -> (i32, i32) {
    %c0_i32 = arith.constant 0 : i32
    %c0_i32_0 = arith.constant 0 : i32
    return %arg0, %c0_i32 : i32, i32
  }
  func.func @transform_1(%arg0: i32) -> (i32, i32) {
    %c0_i32 = arith.constant 0 : i32
    %c0_i32_0 = arith.constant 0 : i32
    %c0_i32_1 = arith.constant 0 : i32
    return %c0_i32, %c0_i32_0 : i32, i32
  }
  func.func @transform_2(%arg0: i32) -> (i32, i32) {
    %c0_i32 = arith.constant 0 : i32
    %c0_i32_0 = arith.constant 0 : i32
    %c0_i32_1 = arith.constant 0 : i32
    return %c0_i32, %c0_i32_0 : i32, i32
  }
  func.func @transform_3(%arg0: i32) -> (i32, i32) {
    %c0_i32 = arith.constant 0 : i32
    %c0_i32_0 = arith.constant 0 : i32
    return %arg0, %c0_i32 : i32, i32
  }
  func.func @transform_4(%arg0: i32) -> (i32, i32) {
    %c0_i32 = arith.constant 0 : i32
    %c0_i32_0 = arith.constant 0 : i32
    return %arg0, %c0_i32 : i32, i32
  }
}

</mosaic_0001>

<llo_original>
// kernel: tpu_custom_call.1
$region0: #{tpu_custom_call.1}
  #allocation0 [shape = 'u32[]', space=smem, size = 0x4, offset = 0x4, fixed_abs, tag = 'smem constant byte address 0x4 - core index']
  #allocation1 [shape = 'u32[144,128]{1,0:T(1,128)}', space=vmem, size = 0x12000, scoped, tag = 'internal scratch']
  %s0 = inlined_call_operand.hbm [shape: f32[8,32], index: 0, kind: input, shape index: {}]
  %s1 = inlined_call_operand.hbm [shape: f32[32,256], index: 1, kind: input, shape index: {}]
  %s2 = inlined_call_operand.vmem [shape: f32[1,256], index: 2, kind: input, shape index: {}]
  %s3 = inlined_call_operand.hbm [shape: f32[8,8], index: 3, kind: output, shape index: {0}]
  %s4 = inlined_call_operand.hbm [shape: f32[8,8], index: 4, kind: output, shape index: {1}]
  %5 = xla_tuple %s3, %s4
  %s6 = sld [smem:[#allocation0]]
  $region38: #{tpu_custom_call.1} parent=0
    _
  %s8 = ssub.s32 1, %s6
  %s9 = scalar_select 0, %s8, %s6
  $region1: #{tpu_custom_call.1} parent=0
    #allocation2 [shape = 'u8[4096]{0}', space=vmem, size = 0x1000, scoped, tag = 'input window, operand 0, single buffered']
    #allocation3 [shape = 's32[1]{0}', space=sflag, size = 0x4, scoped, tag = 'scoped memory for tpu_custom_call.1']
    #allocation4 [shape = 's32[1]{0}', space=sflag, size = 0x4, scoped, tag = 'scoped memory for tpu_custom_call.1']
    #allocation5 [shape = 'u8[32768]{0}', space=vmem, size = 0x8000, scoped, tag = 'input window, operand 1, single buffered']
    #allocation6 [shape = 's32[1]{0}', space=sflag, size = 0x4, scoped, tag = 'scoped memory for tpu_custom_call.1']
    #allocation7 [shape = 'u8[4096]{0}', space=vmem, size = 0x1000, scoped, tag = 'output window, operand 0, single buffered']
    #allocation8 [shape = 'u8[4096]{0}', space=vmem, size = 0x1000, scoped, tag = 'output window, operand 1, single buffered']
    #allocation9 [shape = 's32[1]{0}', space=sflag, size = 0x4, scoped, tag = 'scoped memory for tpu_custom_call.1']
    %10 = vsyncpa [#allocation3], 0
    %11 = vsyncpa [#allocation6], 0
    %12 = vsyncpa [#allocation4], 0
    %13 = vsyncpa [#allocation9], 0
    // Predicated region
    $region2: #{tpu_custom_call.1} parent=1 // pred_check
      _
    $region3: #{tpu_custom_call.1} parent=1 // pred_check_branch
      %15 = sbr.rel (0) target = $region5
    $region4: #{tpu_custom_call.1} parent=1 // pred_region
      %s17 = ssub.s32 128, 128
      %18 = vsyncadd [#allocation3], %s17
      %s20 = sshll.u32 [#allocation2], 4
      %s21 = int_to_ptr.vmem [resolvable:$true] %s20
      %23 = dma.hbm_to_vmem [thread:$0]  %s0, 128, %s21, [#allocation3]
    $region5: #{tpu_custom_call.1} parent=1 // pred_fallthru
      _
    // Predicated region
    $region6: #{tpu_custom_call.1} parent=1 // pred_check
      _
    $region7: #{tpu_custom_call.1} parent=1 // pred_check_branch
      %25 = sbr.rel (0) target = $region9
    $region8: #{tpu_custom_call.1} parent=1 // pred_region
      %s27 = ssub.s32 1024, 1024
      %28 = vsyncadd [#allocation6], %s27
      %s29 = sshll.u32 [#allocation5], 4
      %s30 = int_to_ptr.vmem [resolvable:$true] %s29
      %35 = dma.hbm_to_vmem [thread:$0]  %s1, 1024, %s30, [#allocation6], 256, 256, 16
    $region9: #{tpu_custom_call.1} parent=1 // pred_fallthru
      _
    // Predicated region
    $region10: #{tpu_custom_call.1} parent=1 // pred_check
      _
    $region11: #{tpu_custom_call.1} parent=1 // pred_check_branch
      %37 = sbr.rel (0) target = $region13
    $region12: #{tpu_custom_call.1} parent=1 // pred_region
      _
    $region13: #{tpu_custom_call.1} parent=1 // pred_fallthru
      _
    // Predicated region
    $region14: #{tpu_custom_call.1} parent=1 // pred_check
      _
    $region15: #{tpu_custom_call.1} parent=1 // pred_check_branch
      %39 = sbr.rel (0) target = $region17
    $region16: #{tpu_custom_call.1} parent=1 // pred_region
      %40 = dma.done [#allocation3], 128
    $region17: #{tpu_custom_call.1} parent=1 // pred_fallthru
      _
    // Predicated region
    $region18: #{tpu_custom_call.1} parent=1 // pred_check
      _
    $region19: #{tpu_custom_call.1} parent=1 // pred_check_branch
      %42 = sbr.rel (0) target = $region21
    $region20: #{tpu_custom_call.1} parent=1 // pred_region
      %43 = dma.done [#allocation6], 1024
    $region21: #{tpu_custom_call.1} parent=1 // pred_fallthru
      _
    %v44 = vld [vmem:[#allocation2] sm:$0xff]
    %v45 = vld [vmem:[#allocation5] sm:$0xff]
    %v46 = vld [vmem:[#allocation5 + $0x8] sm:$0xff]
    %v47 = vld [vmem:[#allocation5 + $0x10] sm:$0xff]
    %v48 = vld [vmem:[#allocation5 + $0x18] sm:$0xff]
    %v49 = vld [vmem:[#allocation5 + $0x20] sm:$0xff]
    %v50 = vld [vmem:[#allocation5 + $0x28] sm:$0xff]
    %v51 = vld [vmem:[#allocation5 + $0x30] sm:$0xff]
    %v52 = vld [vmem:[#allocation5 + $0x38] sm:$0xff]
    %v53 = vld [vmem:[%s2] sm:$0x3]
    %v55 = vlaneseq
    %v56 = vshrl.u32 %v55, 7
    %v57 = vsub.s32 0, %v56
    %v58 = vrot.slane %v53, %v57
    %v59 = vlaneseq
    %v60 = vshrl.u32 %v59, 7
    %v61 = vsub.s32 1, %v60
    %v62 = vrot.slane %v53, %v61
    %vm65 = vcmask 261120
    %v67 = vsel %vm65, %v44, 0
    %69 = vmatprep.subr.mxu0 %v46
    %70 = vmatpush1.msra.mxu0 %v45
    %71 = vmatprep.subr.mxu0 %v48
    %72 = vmatpush1.msra.mxu0 %v47
    %73 = vmatprep.subr.mxu0 %v50
    %74 = vmatpush1.msra.mxu0 %v49
    %75 = vmatprep.subr.mxu0 %v52
    %76 = vmatpush1.msra.mxu0 %v51
    %77 = vmatprep.subr.mxu0 0.0
    %78 = vmatpush1.msra.mxu0 0.0
    %79 = vmatprep.subr.mxu0 0.0
    %80 = vmatpush1.msra.mxu0 0.0
    %81 = vmatprep.subr.mxu0 0.0
    %82 = vmatpush1.msra.mxu0 0.0
    %83 = vmatprep.subr.mxu0 0.0
    %84 = vmatpush1.msra.mxu0 0.0
    %85 = vmatprep.subr.mxu0 0.0
    %86 = vmatpush1.msra.mxu0 0.0
    %87 = vmatprep.subr.mxu0 0.0
    %88 = vmatpush1.msra.mxu0 0.0
    %89 = vmatprep.subr.mxu0 0.0
    %90 = vmatpush1.msra.mxu0 0.0
    %91 = vmatprep.subr.mxu0 0.0
    %92 = vmatpush1.msra.mxu0 0.0
    %93 = vmatprep.subr.mxu0 0.0
    %94 = vmatpush1.msra.mxu0 0.0
    %95 = vmatprep.subr.mxu0 0.0
    %96 = vmatpush1.msra.mxu0 0.0
    %97 = vmatprep.subr.mxu0 0.0
    %98 = vmatpush1.msra.mxu0 0.0
    %99 = vmatprep.subr.mxu0 0.0
    %100 = vmatpush1.msra.mxu0 0.0
    %101 = vmatprep.subr.mxu0 0.0
    %102 = vmatpush1.msra.mxu0 0.0
    %103 = vmatprep.subr.mxu0 0.0
    %104 = vmatpush1.msra.mxu0 0.0
    %105 = vmatprep.subr.mxu0 0.0
    %106 = vmatpush1.msra.mxu0 0.0
    %107 = vmatprep.subr.mxu0 0.0
    %108 = vmatpush1.msra.mxu0 0.0
    %109 = vmatprep.subr.mxu0 0.0
    %110 = vmatpush1.msra.mxu0 0.0
    %111 = vmatprep.subr.mxu0 0.0
    %112 = vmatpush1.msra.mxu0 0.0
    %113 = vmatprep.subr.mxu0 0.0
    %114 = vmatpush1.msra.mxu0 0.0
    %115 = vmatprep.subr.mxu0 0.0
    %116 = vmatpush1.msra.mxu0 0.0
    %117 = vmatprep.subr.mxu0 0.0
    %118 = vmatpush1.msra.mxu0 0.0
    %119 = vmatprep.subr.mxu0 0.0
    %120 = vmatpush1.msra.mxu0 0.0
    %121 = vmatprep.subr.mxu0 0.0
    %122 = vmatpush1.msra.mxu0 0.0
    %123 = vmatprep.subr.mxu0 0.0
    %124 = vmatpush1.msra.mxu0 0.0
    %125 = vmatprep.subr.mxu0 0.0
    %126 = vmatpush1.msra.mxu0 0.0
    %127 = vmatprep.subr.mxu0 0.0
    %128 = vmatpush1.msra.mxu0 0.0
    %129 = vmatprep.subr.mxu0 0.0
    %130 = vmatpush1.msra.mxu0 0.0
    %131 = vmatprep.subr.mxu0 0.0
    %132 = vmatpush1.msra.mxu0 0.0
    %133 = vmatprep.mubr.f32.mxu0 0.0
    %134 = vmatmul.mubr.f32.gmra.mrb[0].mxu0 %v67
    %v135 = vpop.f32.mrb[0].mxu0
    %v136 = vadd.f32 %v58, %v135
    %v137 = vpop.f32.mrb[0].mxu0
    %v138 = vadd.f32 %v62, %v137
    %139 = vdwg.mxu0
    %v140 = vmax.f32 %v138, 0.0
    %vm141 = vcmp.ne.f32.partialorder %v138, %v138
    %v142 = vadd.f32 %v138, 0.0
    %v143 = vand.u32 2147483647, %v138
    %v144 = vsub.f32 0.0, %v143
    %v145 = vmul.f32 %v144, 1.442695
    %v146 = vpow.pop %v145
    %v147 = vadd.f32 %v146, 1.0
    %v148 = vlog2.pop %v147
    %v149 = vmul.f32 %v148, 0.6931472
    %v150 = vmul.f32 -0.5, %v146
    %v151 = vadd.f32 %v150, 1.0
    %v152 = vmul.f32 %v151, %v146
    %v153 = vand.u32 2147483647, %v146
    %vm154 = vcmp.lt.f32.partialorder %v153, 0.0004427343
    %v155 = vsel %vm154, %v152, %v149
    %v156 = vadd.f32 %v140, %v155
    %v157 = vsel %vm141, %v142, %v156
    %v158 = vadd.f32 %v157, 0.0001
    %vm159 = vcmask 64512
    %160 = vst.msk [vmem:[#allocation7] sm:$0xff] %vm159, %v136
    %161 = vst.msk [vmem:[#allocation8] sm:$0xff] %vm159, %v158
    // Predicated region
    $region22: #{tpu_custom_call.1} parent=1 // pred_check
      _
    $region23: #{tpu_custom_call.1} parent=1 // pred_check_branch
      %163 = sbr.rel (0) target = $region25
    $region24: #{tpu_custom_call.1} parent=1 // pred_region
      %s165 = ssub.s32 128, 128
      %166 = vsyncadd [#allocation4], %s165
      %s168 = sshll.u32 [#allocation7], 4
      %s169 = int_to_ptr.vmem [resolvable:$true] %s168
      %171 = dma.vmem_to_hbm [thread:$0]  %s169, 128, %s3, [#allocation4]
    $region25: #{tpu_custom_call.1} parent=1 // pred_fallthru
      _
    // Predicated region
    $region26: #{tpu_custom_call.1} parent=1 // pred_check
      _
    $region27: #{tpu_custom_call.1} parent=1 // pred_check_branch
      %173 = sbr.rel (0) target = $region29
    $region28: #{tpu_custom_call.1} parent=1 // pred_region
      %s175 = ssub.s32 128, 128
      %176 = vsyncadd [#allocation9], %s175
      %s178 = sshll.u32 [#allocation8], 4
      %s179 = int_to_ptr.vmem [resolvable:$true] %s178
      %181 = dma.vmem_to_hbm [thread:$0]  %s179, 128, %s4, [#allocation9]
    $region29: #{tpu_custom_call.1} parent=1 // pred_fallthru
      _
    // Predicated region
    $region30: #{tpu_custom_call.1} parent=1 // pred_check
      _
    $region31: #{tpu_custom_call.1} parent=1 // pred_check_branch
      %183 = sbr.rel (0) target = $region33
    $region32: #{tpu_custom_call.1} parent=1 // pred_region
      %184 = dma.done [#allocation4], 128
    $region33: #{tpu_custom_call.1} parent=1 // pred_fallthru
      _
    // Predicated region
    $region34: #{tpu_custom_call.1} parent=1 // pred_check
      _
    $region35: #{tpu_custom_call.1} parent=1 // pred_check_branch
      %186 = sbr.rel (0) target = $region37
    $region36: #{tpu_custom_call.1} parent=1 // pred_region
      %187 = dma.done [#allocation9], 128
    $region37: #{tpu_custom_call.1} parent=1 // pred_fallthru
      _
    %188 = vsyncpa [#allocation3], 1
    %189 = vsyncpa [#allocation6], 1
    %190 = vsyncpa [#allocation4], 1
    %191 = vsyncpa [#allocation9], 1

</llo_original>
